<compile_context>
chip_gen: v7x
topology: tpu7x:2x2x1
jax: 0.10.0
libtpu: 0.0.40
codegen_flags: <defaults>
</compile_context>

<pallas_src>
import jax
import jax.numpy as jnp
from jax.experimental import pallas as pl
from jax.experimental.pallas import tpu as pltpu

NEG_SLOPE = 0.01   # nn.LeakyReLU default
BN_EPS = 1e-5      # nn.BatchNorm2d default
LANE = 128


def _round_up(x, m):
    return (x + m - 1) // m * m


def _cdiv(a, b):
    return -(-a // b)


def _sublane_tile(dtype):
    # f32 -> 8, bf16 -> 16, int8/fp8 -> 32
    return max(8, 32 // jnp.dtype(dtype).itemsize)


def _vmem_limit_bytes():
    """VMEM limit sized to the local chip (v5e/v6e: 128 MiB, v7x: 64 MiB)."""
    try:
        phys = int(pltpu.get_tpu_info().vmem_capacity_bytes)
    except Exception:
        phys = 64 * 1024 * 1024   # v7x per-TC VMEM: the smallest across gens
    return min((phys * 3) // 4, 96 * 1024 * 1024)


def _const_block_spec(block_shape, index_map):
    """BlockSpec for operands whose block index never changes.

    Single-buffering them saves a redundant VMEM copy (meaningful at large
    Cin); silently fall back if this JAX build rejects the hint.
    """
    try:
        return pl.BlockSpec(block_shape, index_map, pipeline_mode=pl.Buffered(1))
    except Exception:
        return pl.BlockSpec(block_shape, index_map)


# --------------------------------------------------------------------------
# Pass 1: conv matmul + per-M-tile partial sum / sum-of-squares.
# No resident accumulator -> the grid axis is fully "parallel" (megacore on
# v7x); partials are reduced in JAX afterwards (tiny).
# --------------------------------------------------------------------------
def _stats_kernel(p_ref, w_ref, sum_ref, sq_ref):
    y = jnp.dot(p_ref[...], w_ref[...], preferred_element_type=jnp.float32)
    s = jnp.sum(y, axis=0, keepdims=True)        # (1, Cpad)
    q = jnp.sum(y * y, axis=0, keepdims=True)    # (1, Cpad)
    # Broadcast across 8 sublanes so the output block is (1, 8, Cpad) and the
    # (8, 128) tiling rule is satisfied regardless of the number of tiles.
    sum_ref[...] = jnp.broadcast_to(s, sum_ref.shape)
    sq_ref[...] = jnp.broadcast_to(q, sq_ref.shape)


def _stats_stash_kernel(p_ref, w_ref, sum_ref, sq_ref, y_ref):
    y = jnp.dot(p_ref[...], w_ref[...], preferred_element_type=jnp.float32)
    s = jnp.sum(y, axis=0, keepdims=True)
    q = jnp.sum(y * y, axis=0, keepdims=True)
    sum_ref[...] = jnp.broadcast_to(s, sum_ref.shape)
    sq_ref[...] = jnp.broadcast_to(q, sq_ref.shape)
    y_ref[...] = y.astype(y_ref.dtype)           # stash conv output for pass 2


# --------------------------------------------------------------------------
# Pass 2: folded BN affine + LeakyReLU, writing only the :Cout columns.
# --------------------------------------------------------------------------
def _make_apply_recompute(cout):
    def kernel(p_ref, w_ref, scale_ref, shift_ref, o_ref):
        y = jnp.dot(p_ref[...], w_ref[...], preferred_element_type=jnp.float32)
        y = y * scale_ref[...] + shift_ref[...]
        y = jnp.where(y > 0, y, NEG_SLOPE * y)
        o_ref[...] = y[:, :cout].astype(o_ref.dtype)
    return kernel


def _make_apply_stash(cout):
    def kernel(y_ref, scale_ref, shift_ref, o_ref):
        y = y_ref[...].astype(jnp.float32)
        y = y * scale_ref[...] + shift_ref[...]
        y = jnp.where(y > 0, y, NEG_SLOPE * y)
        o_ref[...] = y[:, :cout].astype(o_ref.dtype)
    return kernel


def block_forward_nhwc(x_nhwc, w, b, gamma, beta, *,
                       tile_m=None, compute_dtype=jnp.bfloat16,
                       out_dtype=None, stash_y=None):
    """Conv2d(k=3, s=2, p=1) + BatchNorm2d(batch stats) + LeakyReLU, NHWC I/O.

    x_nhwc: (N, H, W, Cin); w: (Cout, Cin, 3, 3); b/gamma/beta: (Cout,)
    returns (N, Ho, Wo, Cout), Ho = (H + 2 - 3)//2 + 1.
    """
    # Conv bias is exactly cancelled by training-mode BN mean subtraction.
    # (It must be reinstated if running/eval statistics are ever used.)
    del b

    N, H, W, Cin = x_nhwc.shape
    Cout = w.shape[0]
    Ho = (H + 2 - 3) // 2 + 1
    Wo = (W + 2 - 3) // 2 + 1
    K = 9 * Cin
    M = N * Ho * Wo
    Cpad = _round_up(Cout, LANE)
    if out_dtype is None:
        out_dtype = x_nhwc.dtype

    itemsize = jnp.dtype(compute_dtype).itemsize
    out_itemsize = jnp.dtype(out_dtype).itemsize
    row_tile = max(_sublane_tile(compute_dtype), _sublane_tile(out_dtype))

    if stash_y is None:
        # Stash the conv output when re-reading the patch stream in pass 2
        # would cost more HBM (and MXU) than writing + reading y once.
        stash_y = (K * itemsize) > (4 * Cpad)

    # ---- VMEM-aware tile selection ----
    vmem_limit = _vmem_limit_bytes()
    budget = (vmem_limit * 3) // 4
    fixed = 2 * K * Cpad * itemsize + 4 * Cpad * 4      # weights (2 bufs) + scale/shift
    per_row = 2 * K * itemsize                          # patch tile, double-buffered
    per_row += 2 * Cout * out_itemsize                  # output tile, double-buffered
    per_row += 4 * Cpad * 4                             # in-kernel f32 intermediates
    if stash_y:
        per_row += 2 * Cpad * itemsize                  # stashed y tile
    if tile_m is None:
        tile_m = max(row_tile, (budget - fixed) // max(per_row, 1))
        tile_m = min(8192, tile_m)   # fat tiles amortize the ~0.35us/grid-step cost
    tm = max(row_tile, min(int(tile_m), _round_up(M, row_tile)))
    tm = _round_up(tm, row_tile)
    n_tiles = _cdiv(M, tm)
    M_pad = n_tiles * tm

    # ---- glue: im2col (pure data movement; duplication factor 9/4) ----
    xp = jnp.pad(x_nhwc, ((0, 0), (1, 1), (1, 1), (0, 0)))
    cols = [xp[:, kh:kh + 2 * Ho:2, kw:kw + 2 * Wo:2, :]
            for kh in range(3) for kw in range(3)]
    patches = jnp.concatenate(cols, axis=-1).reshape(M, K)
    if M_pad != M:
        # Zero rows contribute nothing to sum/sumsq, so BN stats stay exact
        # when divided by the true M.
        # TODO(synk): fold this pad into the im2col construction (or fuse the
        # 3x3 taps in-kernel) to avoid an extra HBM round-trip of the patches.
        patches = jnp.pad(patches, ((0, M_pad - M), (0, 0)))
    patches = patches.astype(compute_dtype)

    # Weight reordered to match the (kh, kw, cin) patch layout; pad Cout->Cpad.
    w_mat = jnp.transpose(w, (2, 3, 1, 0)).reshape(K, Cout).astype(jnp.float32)
    w_mat = jnp.pad(w_mat, ((0, 0), (0, Cpad - Cout))).astype(compute_dtype)
    g_pad = jnp.pad(gamma.astype(jnp.float32), (0, Cpad - Cout))
    beta_pad = jnp.pad(beta.astype(jnp.float32), (0, Cpad - Cout))

    grid = (n_tiles,)
    p_spec = pl.BlockSpec((tm, K), lambda i: (i, 0))
    w_spec = _const_block_spec((K, Cpad), lambda i: (0, 0))
    stat_spec = pl.BlockSpec((1, 8, Cpad), lambda i: (i, 0, 0))
    stat_shape = jax.ShapeDtypeStruct((n_tiles, 8, Cpad), jnp.float32)

    matmul_flops = 2 * M_pad * K * Cpad
    patch_bytes = M_pad * K * itemsize
    w_bytes = K * Cpad * itemsize
    stat_bytes = 2 * n_tiles * 8 * Cpad * 4
    stash_bytes = M_pad * Cpad * itemsize if stash_y else 0
    out_bytes = M_pad * Cout * out_itemsize

    # ---- pass 1: per-tile partial batch statistics (fully parallel grid) ----
    if stash_y:
        out_shape1 = (stat_shape, stat_shape,
                      jax.ShapeDtypeStruct((M_pad, Cpad), compute_dtype))
        out_specs1 = (stat_spec, stat_spec,
                      pl.BlockSpec((tm, Cpad), lambda i: (i, 0)))
        kernel1 = _stats_stash_kernel
    else:
        out_shape1 = (stat_shape, stat_shape)
        out_specs1 = (stat_spec, stat_spec)
        kernel1 = _stats_kernel

    pass1 = pl.pallas_call(
        kernel1,
        out_shape=out_shape1,
        grid=grid,
        in_specs=[p_spec, w_spec],
        out_specs=out_specs1,
        compiler_params=pltpu.CompilerParams(
            dimension_semantics=("parallel",),
            vmem_limit_bytes=vmem_limit),
        cost_estimate=pl.CostEstimate(
            flops=matmul_flops, transcendentals=0,
            bytes_accessed=int(patch_bytes + w_bytes + stat_bytes + stash_bytes)),
    )(patches, w_mat)

    if stash_y:
        p_sum, p_sq, y_stash = pass1
    else:
        p_sum, p_sq = pass1
        y_stash = None

    # ---- fold BN into a single per-channel scale/shift (tiny JAX ops) ----
    inv_m = 1.0 / float(M)                       # true row count (padding excluded)
    sums = p_sum[:, 0, :].sum(axis=0)
    sumsq = p_sq[:, 0, :].sum(axis=0)
    mean = sums * inv_m
    # TODO(synk): one-pass sum/sumsq can lose precision when |mean| >> std and
    # M is very large; switch to a compensated/two-pass scheme if that matters.
    var = jnp.maximum(sumsq * inv_m - mean * mean, 0.0)
    inv_std = jax.lax.rsqrt(var + BN_EPS)
    scale = (g_pad * inv_std).reshape(1, Cpad)
    shift = (beta_pad - mean * g_pad * inv_std).reshape(1, Cpad)

    # ---- pass 2: BN affine + LeakyReLU (parallel grid, narrow output) ----
    scale_spec = _const_block_spec((1, Cpad), lambda i: (0, 0))
    shift_spec = _const_block_spec((1, Cpad), lambda i: (0, 0))
    o_spec = pl.BlockSpec((tm, Cout), lambda i: (i, 0))
    out_shape2 = jax.ShapeDtypeStruct((M_pad, Cout), out_dtype)
    cparams = pltpu.CompilerParams(dimension_semantics=("parallel",),
                                   vmem_limit_bytes=vmem_limit)

    if stash_y:
        out = pl.pallas_call(
            _make_apply_stash(Cout),
            out_shape=out_shape2,
            grid=grid,
            in_specs=[pl.BlockSpec((tm, Cpad), lambda i: (i, 0)),
                      scale_spec, shift_spec],
            out_specs=o_spec,
            compiler_params=cparams,
            cost_estimate=pl.CostEstimate(
                flops=4 * M_pad * Cpad, transcendentals=0,
                bytes_accessed=int(stash_bytes + out_bytes + 2 * Cpad * 4)),
        )(y_stash, scale, shift)
    else:
        out = pl.pallas_call(
            _make_apply_recompute(Cout),
            out_shape=out_shape2,
            grid=grid,
            in_specs=[p_spec, w_spec, scale_spec, shift_spec],
            out_specs=o_spec,
            compiler_params=cparams,
            cost_estimate=pl.CostEstimate(
                flops=matmul_flops + 4 * M_pad * Cpad, transcendentals=0,
                bytes_accessed=int(patch_bytes + w_bytes + out_bytes + 2 * Cpad * 4)),
        )(patches, w_mat, scale, shift)

    return out[:M].reshape(N, Ho, Wo, Cout)


def block_forward(x_nchw, w, b, gamma, beta, **kwargs):
    """PyTorch-layout (NCHW) wrapper around the NHWC fused block."""
    x = jnp.transpose(x_nchw, (0, 2, 3, 1))
    y = block_forward_nhwc(x, w, b, gamma, beta, **kwargs)
    return jnp.transpose(y, (0, 3, 1, 2))


def _reference(x, w, b, gamma, beta):
    """Pure-JAX reference (conv via lax) for the correctness check."""
    y = jax.lax.conv_general_dilated(
        x, w, window_strides=(2, 2), padding=((1, 1), (1, 1)),
        dimension_numbers=("NCHW", "OIHW", "NCHW"))
    y = y + b.reshape(1, -1, 1, 1)
    mean = jnp.mean(y, axis=(0, 2, 3), keepdims=True)
    var = jnp.mean(jnp.square(y - mean), axis=(0, 2, 3), keepdims=True)
    y = (y - mean) * jax.lax.rsqrt(var + BN_EPS)
    y = y * gamma.reshape(1, -1, 1, 1) + beta.reshape(1, -1, 1, 1)
    return jnp.where(y > 0, y, NEG_SLOPE * y)


if __name__ == "__main__":
    key = jax.random.PRNGKey(0)
    N, Cin, H, W = 2, 4, 16, 16
    Cout = 8

    k_x, k_w, k_b, k_g, k_be = jax.random.split(key, 5)
    x = jax.random.normal(k_x, (N, Cin, H, W), dtype=jnp.float32)
    w = jax.random.normal(k_w, (Cout, Cin, 3, 3), dtype=jnp.float32) * 0.1
    b = jax.random.normal(k_b, (Cout,), dtype=jnp.float32) * 0.1
    gamma = 1.0 + 0.1 * jax.random.normal(k_g, (Cout,), dtype=jnp.float32)
    beta = 0.1 * jax.random.normal(k_be, (Cout,), dtype=jnp.float32)

    ref = jax.block_until_ready(_reference(x, w, b, gamma, beta))

    # (1) f32 operands, multi-tile recompute path (grid of 2 -> exercises the
    # per-tile partial-stats reduction). Tight tolerance.
    out_f32 = jax.block_until_ready(
        block_forward(x, w, b, gamma, beta, tile_m=64,
                      compute_dtype=jnp.float32))
    assert out_f32.shape == (N, Cout, H // 2, W // 2), out_f32.shape
    if not jnp.allclose(out_f32, ref, atol=1e-4, rtol=1e-4):
        raise AssertionError("f32 recompute path mismatch vs JAX reference")

    # (2) f32 operands, forced stash-y path (pass 2 reads the conv output
    # written by pass 1 instead of recomputing the matmul). Tight tolerance.
    out_stash = jax.block_until_ready(
        block_forward(x, w, b, gamma, beta, tile_m=64,
                      compute_dtype=jnp.float32, stash_y=True))
    if not jnp.allclose(out_stash, ref, atol=1e-4, rtol=1e-4):
        raise AssertionError("f32 stash path mismatch vs JAX reference")

    # (3) default path: bf16 operands (f32 accumulation), auto tile size.
    out_bf16 = jax.block_until_ready(block_forward(x, w, b, gamma, beta))
    if not jnp.allclose(out_bf16, ref, atol=5e-2, rtol=5e-2):
        raise AssertionError("bf16 default path mismatch vs JAX reference")

    print("KERNEL_OK")
</pallas_src>

<mosaic_0001>
module attributes {stable_mosaic.version = 11 : i64} {
  func.func @_stats_kernel(%arg0: i32, %arg1: memref<64x36xf32, #tpu.memory_space<vmem>>, %arg2: memref<36x128xf32, #tpu.memory_space<vmem>>, %arg3: memref<1x8x128xf32, #tpu.memory_space<vmem>>, %arg4: memref<1x8x128xf32, #tpu.memory_space<vmem>>) attributes {dimension_semantics = [#tpu.dimension_semantics<parallel>], iteration_bounds = array<i64: 2>, scalar_prefetch = 0 : i64, scratch_operands = 0 : i64, tpu.core_type = #tpu.core_type<tc>, window_params = [{transform_indices = @transform_0, window_bounds = array<i64: 64, 36>}, {pipeline_mode = #tpu.pipeline_mode<synchronous>, transform_indices = @transform_1, window_bounds = array<i64: 36, 128>}, {transform_indices = @transform_2, window_bounds = array<i64: 1, 8, 128>}, {transform_indices = @transform_3, window_bounds = array<i64: 1, 8, 128>}]} {
    %c0 = arith.constant 0 : index
    %c0_0 = arith.constant 0 : index
    %0 = vector.load %arg1[%c0, %c0_0] : memref<64x36xf32, #tpu.memory_space<vmem>>, vector<64x36xf32>
    %c0_1 = arith.constant 0 : index
    %c0_2 = arith.constant 0 : index
    %1 = vector.load %arg2[%c0_1, %c0_2] : memref<36x128xf32, #tpu.memory_space<vmem>>, vector<36x128xf32>
    %cst = arith.constant dense<0.000000e+00> : vector<64x128xf32>
    %2 = tpu.matmul %0, %1, %cst {dimension_numbers = #tpu.dot_dimension_numbers<[1], [0], [0], [1], [0, 0, 1, 1], [], []>} : vector<64x36xf32>, vector<36x128xf32>, vector<64x128xf32> -> vector<64x128xf32>
    %cst_3 = arith.constant dense<0.000000e+00> : vector<128xf32>
    %3 = vector.multi_reduction <add>, %2, %cst_3 [0] : vector<64x128xf32> to vector<128xf32>
    %4 = vector.shape_cast %3 : vector<128xf32> to vector<1x128xf32>
    %5 = arith.mulf %2, %2 : vector<64x128xf32>
    %cst_4 = arith.constant dense<0.000000e+00> : vector<128xf32>
    %6 = vector.multi_reduction <add>, %5, %cst_4 [0] : vector<64x128xf32> to vector<128xf32>
    %7 = vector.shape_cast %6 : vector<128xf32> to vector<1x128xf32>
    %8 = vector.shape_cast %4 : vector<1x128xf32> to vector<1x1x128xf32>
    %9 = vector.broadcast %8 : vector<1x1x128xf32> to vector<1x8x128xf32>
    %c0_5 = arith.constant 0 : index
    %c0_6 = arith.constant 0 : index
    %c0_7 = arith.constant 0 : index
    %10 = vector.load %arg3[%c0_5, %c0_6, %c0_7] : memref<1x8x128xf32, #tpu.memory_space<vmem>>, vector<1x8x128xf32>
    tpu.vector_store %arg3[%c0_5, %c0_6, %c0_7], %9 {strides = array<i32>} : memref<1x8x128xf32, #tpu.memory_space<vmem>>, vector<1x8x128xf32>,
    %11 = vector.shape_cast %7 : vector<1x128xf32> to vector<1x1x128xf32>
    %12 = vector.broadcast %11 : vector<1x1x128xf32> to vector<1x8x128xf32>
    %c0_8 = arith.constant 0 : index
    %c0_9 = arith.constant 0 : index
    %c0_10 = arith.constant 0 : index
    %13 = vector.load %arg4[%c0_8, %c0_9, %c0_10] : memref<1x8x128xf32, #tpu.memory_space<vmem>>, vector<1x8x128xf32>
    tpu.vector_store %arg4[%c0_8, %c0_9, %c0_10], %12 {strides = array<i32>} : memref<1x8x128xf32, #tpu.memory_space<vmem>>, vector<1x8x128xf32>,
    return
  }
  func.func @transform_0(%arg0: i32) -> (i32, i32) {
    %c0_i32 = arith.constant 0 : i32
    %c0_i32_0 = arith.constant 0 : i32
    return %arg0, %c0_i32 : i32, i32
  }
  func.func @transform_1(%arg0: i32) -> (i32, i32) {
    %c0_i32 = arith.constant 0 : i32
    %c0_i32_0 = arith.constant 0 : i32
    %c0_i32_1 = arith.constant 0 : i32
    return %c0_i32, %c0_i32_0 : i32, i32
  }
  func.func @transform_2(%arg0: i32) -> (i32, i32, i32) {
    %c0_i32 = arith.constant 0 : i32
    %c0_i32_0 = arith.constant 0 : i32
    %c0_i32_1 = arith.constant 0 : i32
    return %arg0, %c0_i32, %c0_i32_0 : i32, i32, i32
  }
  func.func @transform_3(%arg0: i32) -> (i32, i32, i32) {
    %c0_i32 = arith.constant 0 : i32
    %c0_i32_0 = arith.constant 0 : i32
    %c0_i32_1 = arith.constant 0 : i32
    return %arg0, %c0_i32, %c0_i32_0 : i32, i32, i32
  }
}

</mosaic_0001>

<llo_original>
// kernel: tpu_custom_call.1
$region0: #{tpu_custom_call.1}
  #allocation0 [shape = 'u32[]', space=smem, size = 0x4, offset = 0x4, fixed_abs, tag = 'smem constant byte address 0x4 - core index']
  #allocation1 [shape = 'u32[144,128]{1,0:T(1,128)}', space=vmem, size = 0x12000, scoped, tag = 'internal scratch']
  %s0 = inlined_call_operand.vmem [shape: f32[128,36], index: 0, kind: input, shape index: {}]
  %s1 = inlined_call_operand.vmem [shape: f32[36,128], index: 1, kind: input, shape index: {}]
  %s2 = inlined_call_operand.hbm [shape: f32[2,8,128], index: 2, kind: output, shape index: {0}]
  %s3 = inlined_call_operand.hbm [shape: f32[2,8,128], index: 3, kind: output, shape index: {1}]
  %4 = xla_tuple %s2, %s3
  %s5 = sld [smem:[#allocation0]]
  $region49: #{tpu_custom_call.1} parent=0
    _
  %s7 = ssub.s32 1, %s5
  %s8 = scalar_select 0, %s7, %s5
  $region1: #{tpu_custom_call.1} parent=0
    #allocation2 [shape = 'u8[8192]{0}', space=vmem, size = 0x2000, scoped, tag = 'output window, operand 0']
    #allocation3 [shape = 's32[2]{0}', space=sflag, size = 0x8, scoped, tag = 'scoped memory for tpu_custom_call.1']
    #allocation4 [shape = 'u8[8192]{0}', space=vmem, size = 0x2000, scoped, tag = 'output window, operand 1']
    #allocation5 [shape = 's32[2]{0}', space=sflag, size = 0x8, scoped, tag = 'scoped memory for tpu_custom_call.1']
    %9 = vsyncpa [#allocation3], 0
    %s10 = scalar_lea.sflag [#allocation3], 1
    %11 = vsyncpa %s10, 0
    %12 = vsyncpa [#allocation5], 0
    %s13 = scalar_lea.sflag [#allocation5], 1
    %14 = vsyncpa %s13, 0
    loop: start=0, step=1, limit=4
    $region2: #{tpu_custom_call.1} parent=1 // loop_pre_header
      _
    $region3: #{tpu_custom_call.1} parent=1 // loop_header
      %s16 = sphi 0, %s20
      %p17 = scmp.ge.s32.totalorder %s16, 4
      %s26 = sphi 0, %s28
      %s29 = sphi 0, %s26
      %s30 = sphi 0, %s29
      %s46 = sphi 0, %s30
      %s50 = sphi 0, %s50
      %s52 = sphi 0, %s50
      %s53 = sphi 0, %s52
      %s67 = sphi 0, %s53
      %s73 = sphi 0, %s75
      %s76 = sphi 0, %s73
      %s77 = sphi 0, %s76
      %s93 = sphi 0, %s77
      %s99 = sphi 0, %s101
      %s102 = sphi 0, %s99
      %s103 = sphi 0, %s102
      %s119 = sphi 0, %s103
    $region4: #{tpu_custom_call.1} parent=1 // loop_header_branch
      %19 = sbr.rel (%p17) target = $region8
    $region5: #{tpu_custom_call.1} parent=1 // loop_body
      %s21 = ssub.s32 %s16, 1
      %s22 = ssub.s32 %s16, 2
      %s23 = sadd.s32 %s16, 1
      %s24 = ssub.s32 %s16, %s23
      %p25 = scmp.eq.s32.totalorder %s24, 0
      %s27 = sadd.s32 %s26, 1
      %s28 = scalar_select %p25, %s26, %s27
      %p31 = pneg %p25
      %p32 = scmp.eq.s32.totalorder %s16, 1
      %p33 = por %p31, %p32
      %p34 = scmp.ne.s32.totalorder %s26, %s29
      %p35 = scmp.eq.s32.totalorder %s16, 0
      %p36 = por %p34, %p35
      %p37 = scmp.ne.s32.totalorder %s26, %s29
      %p38 = scmp.eq.s32.totalorder %s21, 1
      %p39 = por %p37, %p38
      %p40 = scmp.ne.s32.totalorder %s29, %s30
      %p41 = scmp.eq.s32.totalorder %s21, 0
      %p42 = por %p40, %p41
      %p43 = scmp.ne.s32.totalorder %s29, %s30
      %p44 = scmp.eq.s32.totalorder %s22, 1
      %p45 = por %p43, %p44
      %p47 = scmp.ne.s32.totalorder %s30, %s46
      %p48 = scmp.eq.s32.totalorder %s22, 0
      %p49 = por %p47, %p48
      %s51 = sadd.s32 %s50, 1
      %p54 = scmp.eq.s32.totalorder %s16, 1
      %p55 = scmp.ne.s32.totalorder %s50, %s52
      %p56 = scmp.eq.s32.totalorder %s16, 0
      %p57 = por %p55, %p56
      %p58 = scmp.ne.s32.totalorder %s50, %s52
      %p59 = scmp.eq.s32.totalorder %s21, 1
      %p60 = por %p58, %p59
      %p61 = scmp.ne.s32.totalorder %s52, %s53
      %p62 = scmp.eq.s32.totalorder %s21, 0
      %p63 = por %p61, %p62
      %p64 = scmp.ne.s32.totalorder %s52, %s53
      %p65 = scmp.eq.s32.totalorder %s22, 1
      %p66 = por %p64, %p65
      %p68 = scmp.ne.s32.totalorder %s53, %s67
      %p69 = scmp.eq.s32.totalorder %s22, 0
      %p70 = por %p68, %p69
      %s71 = ssub.s32 %s16, %s23
      %p72 = scmp.eq.s32.totalorder %s71, 0
      %s74 = sadd.s32 %s73, 1
      %s75 = scalar_select %p72, %s73, %s74
      %p78 = pneg %p72
      %p79 = scmp.eq.s32.totalorder %s16, 1
      %p80 = por %p78, %p79
      %p81 = scmp.ne.s32.totalorder %s73, %s76
      %p82 = scmp.eq.s32.totalorder %s16, 0
      %p83 = por %p81, %p82
      %p84 = scmp.ne.s32.totalorder %s73, %s76
      %p85 = scmp.eq.s32.totalorder %s21, 1
      %p86 = por %p84, %p85
      %p87 = scmp.ne.s32.totalorder %s76, %s77
      %p88 = scmp.eq.s32.totalorder %s21, 0
      %p89 = por %p87, %p88
      %p90 = scmp.ne.s32.totalorder %s76, %s77
      %p91 = scmp.eq.s32.totalorder %s22, 1
      %p92 = por %p90, %p91
      %p94 = scmp.ne.s32.totalorder %s77, %s93
      %p95 = scmp.eq.s32.totalorder %s22, 0
      %p96 = por %p94, %p95
      %s97 = ssub.s32 %s16, %s23
      %p98 = scmp.eq.s32.totalorder %s97, 0
      %s100 = sadd.s32 %s99, 1
      %s101 = scalar_select %p98, %s99, %s100
      %p104 = pneg %p98
      %p105 = scmp.eq.s32.totalorder %s16, 1
      %p106 = por %p104, %p105
      %p107 = scmp.ne.s32.totalorder %s99, %s102
      %p108 = scmp.eq.s32.totalorder %s16, 0
      %p109 = por %p107, %p108
      %p110 = scmp.ne.s32.totalorder %s99, %s102
      %p111 = scmp.eq.s32.totalorder %s21, 1
      %p112 = por %p110, %p111
      %p113 = scmp.ne.s32.totalorder %s102, %s103
      %p114 = scmp.eq.s32.totalorder %s21, 0
      %p115 = por %p113, %p114
      %p116 = scmp.ne.s32.totalorder %s102, %s103
      %p117 = scmp.eq.s32.totalorder %s22, 1
      %p118 = por %p116, %p117
      %p120 = scmp.ne.s32.totalorder %s103, %s119
      %p121 = scmp.eq.s32.totalorder %s22, 0
      %p122 = por %p120, %p121
      %p123 = scmp.le.s32.totalorder 1, %s16
      %p124 = scmp.lt.s32.totalorder %s16, 3
      %p125 = pnand %p123, %p124
      %p126 = pneg %p125
      // Predicated region
      $region9: #{tpu_custom_call.1} parent=5 // pred_check
        _
      $region10: #{tpu_custom_call.1} parent=5 // pred_check_branch
        %128 = sbr.rel (%p125) target = $region12
      $region11: #{tpu_custom_call.1} parent=5 // pred_region
        %s129 = ssub.s32 %s16, 1
        // Predicated region
        $region13: #{tpu_custom_call.1} parent=11 // pred_check
          %p130 = pneg %p63
        $region14: #{tpu_custom_call.1} parent=11 // pred_check_branch
          %132 = sbr.rel (%p130) target = $region16
        $region15: #{tpu_custom_call.1} parent=11 // pred_region
          _
        $region16: #{tpu_custom_call.1} parent=11 // pred_fallthru
          _
      $region12: #{tpu_custom_call.1} parent=5 // pred_fallthru
        _
      %p133 = scmp.lt.s32.totalorder %s16, 2
      // Predicated region
      $region17: #{tpu_custom_call.1} parent=5 // pred_check
        %p134 = pneg %p133
      $region18: #{tpu_custom_call.1} parent=5 // pred_check_branch
        %136 = sbr.rel (%p134) target = $region20
      $region19: #{tpu_custom_call.1} parent=5 // pred_region
        // Predicated region
        $region21: #{tpu_custom_call.1} parent=19 // pred_check
          %p137 = pneg %p36
        $region22: #{tpu_custom_call.1} parent=19 // pred_check_branch
          %139 = sbr.rel (%p137) target = $region24
        $region23: #{tpu_custom_call.1} parent=19 // pred_region
          %s140 = smul.u32 8, %s16
          %p141 = scmp.lt.s32.totalorder %s140, 15
          %s142 = scalar_select %p141, %s140, 15
          %s143 = smul.addr %s142, 8
          %s144 = scalar_lea.vmem %s0, %s143
          %s145 = smul.u32 8, %s16
        $region24: #{tpu_custom_call.1} parent=19 // pred_fallthru
          _
      $region20: #{tpu_custom_call.1} parent=5 // pred_fallthru
        _
      %p146 = scmp.le.s32.totalorder 1, %s16
      %p147 = scmp.lt.s32.totalorder %s16, 3
      %p148 = pnand %p146, %p147
      %p149 = pneg %p148
      // Predicated region
      $region25: #{tpu_custom_call.1} parent=5 // pred_check
        _
      $region26: #{tpu_custom_call.1} parent=5 // pred_check_branch
        %151 = sbr.rel (%p148) target = $region28
      $region27: #{tpu_custom_call.1} parent=5 // pred_region
        %s152 = ssub.s32 %s16, 1
        %s153 = smul.u32 8, %s21
        %p154 = scmp.lt.s32.totalorder %s153, 15
        %s155 = scalar_select %p154, %s153, 15
        %s156 = smul.addr %s155, 8
        %s157 = scalar_lea.vmem %s0, %s156
        %p158 = pneg %p42
        %p159 = pneg %p39
        %p160 = pneg %p63
        %p161 = pneg %p60
        %p162 = pneg %p89
        %p163 = pneg %p86
        %s164 = sand.u32 %s76, 1
        %s165 = scalar_lea.sflag [#allocation3], %s164
        %s166 = sand.u32 %s76, 1
        %s167 = smul.addr %s166, 8
        %s168 = scalar_lea.vmem [#allocation2], %s167
        %p169 = pneg %p115
        %p170 = pneg %p112
        %s171 = sand.u32 %s102, 1
        %s172 = scalar_lea.sflag [#allocation5], %s171
        %s173 = sand.u32 %s102, 1
        %s174 = smul.addr %s173, 8
        %s175 = scalar_lea.vmem [#allocation4], %s174
        %s176 = smul.u32 8, %s21
        %p177 = scmp.lt.s32.totalorder %s176, 15
        %s178 = scalar_select %p177, %s176, 15
        %s179 = smul.addr %s178, 8
        %s180 = scalar_lea.vmem %s0, %s179
        %s181 = smul.u32 8, %s21
        %v182 = vld [vmem:[%s180] sm:$0xff]
        %v183 = vld [vmem:[%s180 + $0x8] sm:$0xff]
        %v184 = vld [vmem:[%s180 + $0x10] sm:$0xff]
        %v185 = vld [vmem:[%s180 + $0x18] sm:$0xff]
        %v186 = vld [vmem:[%s180 + $0x20] sm:$0xff]
        %v187 = vld [vmem:[%s180 + $0x28] sm:$0xff]
        %v188 = vld [vmem:[%s180 + $0x30] sm:$0xff]
        %v189 = vld [vmem:[%s180 + $0x38] sm:$0xff]
        %v190 = vld [vmem:[%s1] sm:$0xff]
        %v191 = vld [vmem:[%s1 + $0x8] sm:$0xff]
        %v192 = vld [vmem:[%s1 + $0x10] sm:$0xff]
        %v193 = vld [vmem:[%s1 + $0x18] sm:$0xff]
        %v194 = vld [vmem:[%s1 + $0x20] sm:$0xf]
        %vm195 = vcmask 293888
        %v197 = vsel %vm195, %v182, 0
        %v200 = vsel %vm195, %v183, 0
        %v203 = vsel %vm195, %v184, 0
        %v206 = vsel %vm195, %v185, 0
        %v209 = vsel %vm195, %v186, 0
        %v212 = vsel %vm195, %v187, 0
        %v215 = vsel %vm195, %v188, 0
        %v218 = vsel %vm195, %v189, 0
        %vm220 = vcmask 1043456
        %v222 = vsel %vm220, %v194, 0
        %224 = vmatprep.subr.mxu0 0.0
        %225 = vmatpush1.msra.mxu0 %v190
        %226 = vmatprep.subr.mxu0 0.0
        %227 = vmatpush1.msra.mxu0 %v191
        %228 = vmatprep.subr.mxu0 0.0
        %229 = vmatpush1.msra.mxu0 %v192
        %230 = vmatprep.subr.mxu0 0.0
        %231 = vmatpush1.msra.mxu0 %v193
        %232 = vmatprep.subr.mxu0 0.0
        %233 = vmatpush1.msra.mxu0 %v222
        %234 = vmatprep.subr.mxu0 0.0
        %235 = vmatpush1.msra.mxu0 0.0
        %236 = vmatprep.subr.mxu0 0.0
        %237 = vmatpush1.msra.mxu0 0.0
        %238 = vmatprep.subr.mxu0 0.0
        %239 = vmatpush1.msra.mxu0 0.0
        %240 = vmatprep.subr.mxu0 0.0
        %241 = vmatpush1.msra.mxu0 0.0
        %242 = vmatprep.subr.mxu0 0.0
        %243 = vmatpush1.msra.mxu0 0.0
        %244 = vmatprep.subr.mxu0 0.0
        %245 = vmatpush1.msra.mxu0 0.0
        %246 = vmatprep.subr.mxu0 0.0
        %247 = vmatpush1.msra.mxu0 0.0
        %248 = vmatprep.subr.mxu0 0.0
        %249 = vmatpush1.msra.mxu0 0.0
        %250 = vmatprep.subr.mxu0 0.0
        %251 = vmatpush1.msra.mxu0 0.0
        %252 = vmatprep.subr.mxu0 0.0
        %253 = vmatpush1.msra.mxu0 0.0
        %254 = vmatprep.subr.mxu0 0.0
        %255 = vmatpush1.msra.mxu0 0.0
        %256 = vmatprep.subr.mxu0 0.0
        %257 = vmatpush1.msra.mxu0 0.0
        %258 = vmatprep.subr.mxu0 0.0
        %259 = vmatpush1.msra.mxu0 0.0
        %260 = vmatprep.subr.mxu0 0.0
        %261 = vmatpush1.msra.mxu0 0.0
        %262 = vmatprep.subr.mxu0 0.0
        %263 = vmatpush1.msra.mxu0 0.0
        %264 = vmatprep.subr.mxu0 0.0
        %265 = vmatpush1.msra.mxu0 0.0
        %266 = vmatprep.subr.mxu0 0.0
        %267 = vmatpush1.msra.mxu0 0.0
        %268 = vmatprep.subr.mxu0 0.0
        %269 = vmatpush1.msra.mxu0 0.0
        %270 = vmatprep.subr.mxu0 0.0
        %271 = vmatpush1.msra.mxu0 0.0
        %272 = vmatprep.subr.mxu0 0.0
        %273 = vmatpush1.msra.mxu0 0.0
        %274 = vmatprep.subr.mxu0 0.0
        %275 = vmatpush1.msra.mxu0 0.0
        %276 = vmatprep.subr.mxu0 0.0
        %277 = vmatpush1.msra.mxu0 0.0
        %278 = vmatprep.subr.mxu0 0.0
        %279 = vmatpush1.msra.mxu0 0.0
        %280 = vmatprep.subr.mxu0 0.0
        %281 = vmatpush1.msra.mxu0 0.0
        %282 = vmatprep.subr.mxu0 0.0
        %283 = vmatpush1.msra.mxu0 0.0
        %284 = vmatprep.subr.mxu0 0.0
        %285 = vmatpush1.msra.mxu0 0.0
        %286 = vmatprep.subr.mxu0 0.0
        %287 = vmatpush1.msra.mxu0 0.0
        %288 = vmatprep.mubr.f32.mxu0 0.0
        %289 = vmatmul.mubr.f32.gmra.mrb[0].mxu0 %v197
        %v290 = vpop.f32.mrb[0].mxu0
        %v291 = vadd.f32 0.0, %v290
        %v292 = vpop.f32.mrb[0].mxu0
        %293 = vmatprep.mubr.f32.mxu0 0.0
        %294 = vmatmul.mubr.f32.gmra.mrb[0].mxu0 %v200
        %v295 = vpop.f32.mrb[0].mxu0
        %v296 = vadd.f32 0.0, %v295
        %v297 = vpop.f32.mrb[0].mxu0
        %298 = vmatprep.mubr.f32.mxu0 0.0
        %299 = vmatmul.mubr.f32.gmra.mrb[0].mxu0 %v203
        %v300 = vpop.f32.mrb[0].mxu0
        %v301 = vadd.f32 0.0, %v300
        %v302 = vpop.f32.mrb[0].mxu0
        %303 = vmatprep.mubr.f32.mxu0 0.0
        %304 = vmatmul.mubr.f32.gmra.mrb[0].mxu0 %v206
        %v305 = vpop.f32.mrb[0].mxu0
        %v306 = vadd.f32 0.0, %v305
        %v307 = vpop.f32.mrb[0].mxu0
        %308 = vmatprep.mubr.f32.mxu0 0.0
        %309 = vmatmul.mubr.f32.gmra.mrb[0].mxu0 %v209
        %v310 = vpop.f32.mrb[0].mxu0
        %v311 = vadd.f32 0.0, %v310
        %v312 = vpop.f32.mrb[0].mxu0
        %313 = vmatprep.mubr.f32.mxu0 0.0
        %314 = vmatmul.mubr.f32.gmra.mrb[0].mxu0 %v212
        %v315 = vpop.f32.mrb[0].mxu0
        %v316 = vadd.f32 0.0, %v315
        %v317 = vpop.f32.mrb[0].mxu0
        %318 = vmatprep.mubr.f32.mxu0 0.0
        %319 = vmatmul.mubr.f32.gmra.mrb[0].mxu0 %v215
        %v320 = vpop.f32.mrb[0].mxu0
        %v321 = vadd.f32 0.0, %v320
        %v322 = vpop.f32.mrb[0].mxu0
        %323 = vmatprep.mubr.f32.mxu0 0.0
        %324 = vmatmul.mubr.f32.gmra.mrb[0].mxu0 %v218
        %v325 = vpop.f32.mrb[0].mxu0
        %v326 = vadd.f32 0.0, %v325
        %v327 = vpop.f32.mrb[0].mxu0
        %328 = vdwg.mxu0
        %v329 = vadd.f32 %v291, %v296
        %v330 = vadd.f32 %v329, %v301
        %v331 = vadd.f32 %v330, %v306
        %v332 = vadd.f32 %v331, %v311
        %v333 = vadd.f32 %v332, %v316
        %v334 = vadd.f32 %v333, %v321
        %v335 = vadd.f32 %v334, %v326
        %v336 = vrot.slane %v335, 4
        %v337 = vadd.f32 %v335, %v336
        %v338 = vrot.slane %v337, 2
        %v339 = vadd.f32 %v337, %v338
        %v340 = vrot.slane %v339, 1
        %v341 = vadd.f32 %v339, %v340
        %v342 = vmul.f32 %v291, %v291
        %v343 = vmul.f32 %v296, %v296
        %v344 = vmul.f32 %v301, %v301
        %v345 = vmul.f32 %v306, %v306
        %v346 = vmul.f32 %v311, %v311
        %v347 = vmul.f32 %v316, %v316
        %v348 = vmul.f32 %v321, %v321
        %v349 = vmul.f32 %v326, %v326
        %v350 = vadd.f32 %v342, %v343
        %v351 = vadd.f32 %v350, %v344
        %v352 = vadd.f32 %v351, %v345
        %v353 = vadd.f32 %v352, %v346
        %v354 = vadd.f32 %v353, %v347
        %v355 = vadd.f32 %v354, %v348
        %v356 = vadd.f32 %v355, %v349
        %v357 = vrot.slane %v356, 4
        %v358 = vadd.f32 %v356, %v357
        %v359 = vrot.slane %v358, 2
        %v360 = vadd.f32 %v358, %v359
        %v361 = vrot.slane %v360, 1
        %v362 = vadd.f32 %v360, %v361
        %363 = vst [vmem:[%s168] sm:$0xff] %v341
        %364 = vst [vmem:[%s175] sm:$0xff] %v362
        %s365 = sand.u32 %s76, 1
        %s366 = scalar_lea.sflag [#allocation3], %s365
        %s367 = sand.u32 %s76, 1
        %s368 = smul.addr %s367, 8
        %s369 = scalar_lea.vmem [#allocation2], %s368
        %s370 = sand.u32 %s102, 1
        %s371 = scalar_lea.sflag [#allocation5], %s370
        %s372 = sand.u32 %s102, 1
        %s373 = smul.addr %s372, 8
        %s374 = scalar_lea.vmem [#allocation4], %s373
        // Predicated region
        $region29: #{tpu_custom_call.1} parent=27 // pred_check
          %p375 = pneg %p86
        $region30: #{tpu_custom_call.1} parent=27 // pred_check_branch
          %377 = sbr.rel (%p375) target = $region32
        $region31: #{tpu_custom_call.1} parent=27 // pred_region
          %s379 = ssub.s32 128, 128
          %380 = vsyncadd %s366, %s379
          %s381 = smul.addr %s21, 128
          %s382 = scalar_lea.hbm %s2, %s381
          %s384 = sshll.u32 %s369, 4
          %s385 = int_to_ptr.vmem [resolvable:$true] %s384
          %387 = dma.vmem_to_hbm [thread:$0]  %s385, 128, %s382, %s366
        $region32: #{tpu_custom_call.1} parent=27 // pred_fallthru
          _
        // Predicated region
        $region33: #{tpu_custom_call.1} parent=27 // pred_check
          %p388 = pneg %p112
        $region34: #{tpu_custom_call.1} parent=27 // pred_check_branch
          %390 = sbr.rel (%p388) target = $region36
        $region35: #{tpu_custom_call.1} parent=27 // pred_region
          %s392 = ssub.s32 128, 128
          %393 = vsyncadd %s371, %s392
          %s394 = smul.addr %s21, 128
          %s395 = scalar_lea.hbm %s3, %s394
          %s397 = sshll.u32 %s374, 4
          %s398 = int_to_ptr.vmem [resolvable:$true] %s397
          %400 = dma.vmem_to_hbm [thread:$0]  %s398, 128, %s395, %s371
        $region36: #{tpu_custom_call.1} parent=27 // pred_fallthru
          _
      $region28: #{tpu_custom_call.1} parent=5 // pred_fallthru
        _
      %p401 = scmp.le.s32.totalorder 2, %s16
      // Predicated region
      $region37: #{tpu_custom_call.1} parent=5 // pred_check
        %p402 = pneg %p401
      $region38: #{tpu_custom_call.1} parent=5 // pred_check_branch
        %404 = sbr.rel (%p402) target = $region40
      $region39: #{tpu_custom_call.1} parent=5 // pred_region
        %s405 = ssub.s32 %s16, 2
        // Predicated region
        $region41: #{tpu_custom_call.1} parent=39 // pred_check
          %p406 = pneg %p92
        $region42: #{tpu_custom_call.1} parent=39 // pred_check_branch
          %408 = sbr.rel (%p406) target = $region44
        $region43: #{tpu_custom_call.1} parent=39 // pred_region
          %s409 = sand.u32 %s77, 1
          %s410 = scalar_lea.sflag [#allocation3], %s409
          %s411 = sand.u32 %s77, 1
          %s412 = smul.addr %s411, 8
          %s413 = scalar_lea.vmem [#allocation2], %s412
          %414 = dma.done %s410, 128
        $region44: #{tpu_custom_call.1} parent=39 // pred_fallthru
          _
        // Predicated region
        $region45: #{tpu_custom_call.1} parent=39 // pred_check
          %p415 = pneg %p118
        $region46: #{tpu_custom_call.1} parent=39 // pred_check_branch
          %417 = sbr.rel (%p415) target = $region48
        $region47: #{tpu_custom_call.1} parent=39 // pred_region
          %s418 = sand.u32 %s103, 1
          %s419 = scalar_lea.sflag [#allocation5], %s418
          %s420 = sand.u32 %s103, 1
          %s421 = smul.addr %s420, 8
          %s422 = scalar_lea.vmem [#allocation4], %s421
          %423 = dma.done %s419, 128
        $region48: #{tpu_custom_call.1} parent=39 // pred_fallthru
          _
      $region40: #{tpu_custom_call.1} parent=5 // pred_fallthru
        _
    $region6: #{tpu_custom_call.1} parent=1 // loop_footer
      %s20 = sadd.s32 1, %s16
    $region7: #{tpu_custom_call.1} parent=1 // loop_footer_branch
      %15 = sbr.rel target = $region3
    $region8: #{tpu_custom_call.1} parent=1 // loop_exit
      _
    %424 = vsyncpa [#allocation3], 1
    %s425 = scalar_lea.sflag [#allocation3], 1
    %426 = vsyncpa %s425, 1
    %427 = vsyncpa [#allocation5], 1
    %s428 = scalar_lea.sflag [#allocation5], 1
    %429 = vsyncpa %s428, 1

</llo_original>
